<compile_context>
chip_gen: v7x
topology: tpu7x:2x2x1
jax: 0.10.0
libtpu: 0.0.40
codegen_flags: <defaults>
</compile_context>

<pallas_src>
import jax
import jax.numpy as jnp
from jax.experimental import pallas as pl
from jax.experimental.pallas import tpu as pltpu

C_IN = 3
C_OUT = 8
LANES = 128


def conv1x1_kernel(x_ref, w_ref, b_ref, o_ref):
    # x_ref: (C_IN, M_pad)   channels on sublanes, pixels on lanes
    # w_ref: (C_OUT, C_IN)   tiny weight block resident in VMEM
    # b_ref: (C_OUT, 1)
    # o_ref: (C_OUT, M_pad)  lane-dense output (M_pad multiple of 128)
    x = x_ref[...]
    w = w_ref[...]
    b = b_ref[...]
    # VPU broadcast multiply-accumulate over the 3 input channels.
    acc = w[:, 0:1] * x[0:1, :]
    for c in range(1, C_IN):
        acc = acc + w[:, c:c + 1] * x[c:c + 1, :]
    o_ref[...] = (acc + b).astype(o_ref.dtype)


def conv1x1_pad1(x, weight, bias):
    """x: (1, C_IN, H, W) f32; weight: (C_OUT, C_IN); bias: (C_OUT,).

    Returns (1, C_OUT, (H+2)*(W+2)) — the conv output with padding=1,
    spatially flattened (channels-first), matching the PyTorch module's
    intended view.
    """
    N, C, H, W = x.shape
    assert N == 1 and C == C_IN
    # padding=1 with a 1x1 kernel: zero border; bias still applies there
    # (the kernel adds bias to every column, including the zero border).
    xp = jnp.pad(x, ((0, 0), (0, 0), (1, 1), (1, 1)))
    Hp, Wp = H + 2, W + 2
    M = Hp * Wp

    # N=1 -> no transpose needed: (1, C_IN, Hp, Wp) reshapes straight to (C_IN, M).
    x_flat = xp.reshape(C_IN, M)
    # Pad the pixel (lane) axis to a multiple of 128 for full-width vregs.
    M_pad = pl.cdiv(M, LANES) * LANES
    x_flat = jnp.pad(x_flat, ((0, 0), (0, M_pad - M)))

    w_mat = weight.astype(jnp.float32)                 # (C_OUT, C_IN)
    b_col = bias.reshape(C_OUT, 1).astype(jnp.float32)  # (C_OUT, 1)

    # Whole problem fits in VMEM on every generation (~200 KB) -> one block,
    # one grid step; no per-step pipeline overhead.
    out_flat = pl.pallas_call(
        conv1x1_kernel,
        out_shape=jax.ShapeDtypeStruct((C_OUT, M_pad), jnp.float32),
        grid=(1,),
        in_specs=[
            pl.BlockSpec((C_IN, M_pad), lambda i: (0, 0)),
            pl.BlockSpec((C_OUT, C_IN), lambda i: (0, 0)),
            pl.BlockSpec((C_OUT, 1), lambda i: (0, 0)),
        ],
        out_specs=pl.BlockSpec((C_OUT, M_pad), lambda i: (0, 0)),
        compiler_params=pltpu.CompilerParams(
            dimension_semantics=("arbitrary",)),
    )(x_flat, w_mat, b_col)

    # Drop the lane padding and present as (N, C_OUT, Hp*Wp) — no transpose.
    return out_flat[:, :M].reshape(1, C_OUT, M)


def reference(x, weight, bias):
    # pure-JAX reference for the same 1x1 conv with padding=1
    xp = jnp.pad(x, ((0, 0), (0, 0), (1, 1), (1, 1)))
    out = jnp.einsum("nchw,oc->nohw", xp, weight) + bias[None, :, None, None]
    N, Co, Hp, Wp = out.shape
    return out.reshape(N, Co, Hp * Wp)


if __name__ == "__main__":
    key = jax.random.PRNGKey(0)
    kx, kw, kb = jax.random.split(key, 3)

    # small shapes consistent with the module: N=1, C_in=3, spatial=16
    N, H, W = 1, 16, 16
    x = jax.random.normal(kx, (N, C_IN, H, W), dtype=jnp.float32)

    # deterministic parameter init (Conv2d(3, 8, 1) -> weight (8,3,1,1), bias (8,))
    fan_in = C_IN * 1 * 1
    bound = 1.0 / (fan_in ** 0.5)
    weight = jax.random.uniform(kw, (C_OUT, C_IN), jnp.float32, -bound, bound)
    bias = jax.random.uniform(kb, (C_OUT,), jnp.float32, -bound, bound)

    out = conv1x1_pad1(x, weight, bias)
    out = jax.block_until_ready(out)

    ref = reference(x, weight, bias)
    assert out.shape == (N, C_OUT, (H + 2) * (W + 2)), out.shape
    assert jnp.allclose(out, ref, atol=1e-5, rtol=1e-5)

    print("KERNEL_OK")
</pallas_src>

<mosaic_0001>
module attributes {stable_mosaic.version = 11 : i64} {
  func.func @conv1x1_kernel(%arg0: i32, %arg1: memref<3x384xf32, #tpu.memory_space<vmem>>, %arg2: memref<8x3xf32, #tpu.memory_space<vmem>>, %arg3: memref<8x1xf32, #tpu.memory_space<vmem>>, %arg4: memref<8x384xf32, #tpu.memory_space<vmem>>) attributes {dimension_semantics = [#tpu.dimension_semantics<arbitrary>], iteration_bounds = array<i64: 1>, scalar_prefetch = 0 : i64, scratch_operands = 0 : i64, tpu.core_type = #tpu.core_type<tc>, window_params = [{pipeline_mode = #tpu.pipeline_mode<synchronous>, transform_indices = @transform_0, window_bounds = array<i64: 3, 384>}, {pipeline_mode = #tpu.pipeline_mode<synchronous>, transform_indices = @transform_1, window_bounds = array<i64: 8, 3>}, {pipeline_mode = #tpu.pipeline_mode<synchronous>, transform_indices = @transform_2, window_bounds = array<i64: 8, 1>}, {pipeline_mode = #tpu.pipeline_mode<synchronous>, transform_indices = @transform_3, window_bounds = array<i64: 8, 384>}]} {
    %c0 = arith.constant 0 : index
    %c0_0 = arith.constant 0 : index
    %0 = vector.load %arg1[%c0, %c0_0] : memref<3x384xf32, #tpu.memory_space<vmem>>, vector<3x384xf32>
    %c0_1 = arith.constant 0 : index
    %c0_2 = arith.constant 0 : index
    %1 = vector.load %arg2[%c0_1, %c0_2] : memref<8x3xf32, #tpu.memory_space<vmem>>, vector<8x3xf32>
    %c0_3 = arith.constant 0 : index
    %c0_4 = arith.constant 0 : index
    %2 = vector.load %arg3[%c0_3, %c0_4] : memref<8x1xf32, #tpu.memory_space<vmem>>, vector<8x1xf32>
    %3 = vector.extract_strided_slice %1 {offsets = [0, 0], sizes = [8, 1], strides = [1, 1]} : vector<8x3xf32> to vector<8x1xf32>
    %4 = vector.extract_strided_slice %0 {offsets = [0, 0], sizes = [1, 384], strides = [1, 1]} : vector<3x384xf32> to vector<1x384xf32>
    %5 = vector.broadcast %3 : vector<8x1xf32> to vector<8x384xf32>
    %6 = vector.broadcast %4 : vector<1x384xf32> to vector<8x384xf32>
    %7 = arith.mulf %5, %6 : vector<8x384xf32>
    %8 = vector.extract_strided_slice %1 {offsets = [0, 1], sizes = [8, 1], strides = [1, 1]} : vector<8x3xf32> to vector<8x1xf32>
    %9 = vector.extract_strided_slice %0 {offsets = [1, 0], sizes = [1, 384], strides = [1, 1]} : vector<3x384xf32> to vector<1x384xf32>
    %10 = vector.broadcast %8 : vector<8x1xf32> to vector<8x384xf32>
    %11 = vector.broadcast %9 : vector<1x384xf32> to vector<8x384xf32>
    %12 = arith.mulf %10, %11 : vector<8x384xf32>
    %13 = arith.addf %7, %12 : vector<8x384xf32>
    %14 = vector.extract_strided_slice %1 {offsets = [0, 2], sizes = [8, 1], strides = [1, 1]} : vector<8x3xf32> to vector<8x1xf32>
    %15 = vector.extract_strided_slice %0 {offsets = [2, 0], sizes = [1, 384], strides = [1, 1]} : vector<3x384xf32> to vector<1x384xf32>
    %16 = vector.broadcast %14 : vector<8x1xf32> to vector<8x384xf32>
    %17 = vector.broadcast %15 : vector<1x384xf32> to vector<8x384xf32>
    %18 = arith.mulf %16, %17 : vector<8x384xf32>
    %19 = arith.addf %13, %18 : vector<8x384xf32>
    %20 = vector.broadcast %2 : vector<8x1xf32> to vector<8x384xf32>
    %21 = arith.addf %19, %20 : vector<8x384xf32>
    %c0_5 = arith.constant 0 : index
    %c0_6 = arith.constant 0 : index
    %22 = vector.load %arg4[%c0_5, %c0_6] : memref<8x384xf32, #tpu.memory_space<vmem>>, vector<8x384xf32>
    tpu.vector_store %arg4[%c0_5, %c0_6], %21 {strides = array<i32>} : memref<8x384xf32, #tpu.memory_space<vmem>>, vector<8x384xf32>,
    return
  }
  func.func @transform_0(%arg0: i32) -> (i32, i32) {
    %c0_i32 = arith.constant 0 : i32
    %c0_i32_0 = arith.constant 0 : i32
    %c0_i32_1 = arith.constant 0 : i32
    return %c0_i32, %c0_i32_0 : i32, i32
  }
  func.func @transform_1(%arg0: i32) -> (i32, i32) {
    %c0_i32 = arith.constant 0 : i32
    %c0_i32_0 = arith.constant 0 : i32
    %c0_i32_1 = arith.constant 0 : i32
    return %c0_i32, %c0_i32_0 : i32, i32
  }
  func.func @transform_2(%arg0: i32) -> (i32, i32) {
    %c0_i32 = arith.constant 0 : i32
    %c0_i32_0 = arith.constant 0 : i32
    %c0_i32_1 = arith.constant 0 : i32
    return %c0_i32, %c0_i32_0 : i32, i32
  }
  func.func @transform_3(%arg0: i32) -> (i32, i32) {
    %c0_i32 = arith.constant 0 : i32
    %c0_i32_0 = arith.constant 0 : i32
    %c0_i32_1 = arith.constant 0 : i32
    return %c0_i32, %c0_i32_0 : i32, i32
  }
}

</mosaic_0001>

<llo_original>
// kernel: tpu_custom_call.1
$region0: #{tpu_custom_call.1}
  #allocation0 [shape = 'u32[]', space=smem, size = 0x4, offset = 0x4, fixed_abs, tag = 'smem constant byte address 0x4 - core index']
  #allocation1 [shape = 'u32[144,128]{1,0:T(1,128)}', space=vmem, size = 0x12000, scoped, tag = 'internal scratch']
  %s0 = inlined_call_operand.vmem [shape: f32[3,384], index: 0, kind: input, shape index: {}]
  %s1 = inlined_call_operand.vmem [shape: f32[8,3], index: 1, kind: input, shape index: {}]
  %s2 = inlined_call_operand.vmem [shape: f32[8,1], index: 2, kind: input, shape index: {}]
  %s3 = inlined_call_operand.hbm [shape: f32[8,384], index: 3, kind: output, shape index: {}]
  %s4 = sld [smem:[#allocation0]]
  $region22: #{tpu_custom_call.1} parent=0
    _
  %s6 = ssub.s32 1, %s4
  %s7 = scalar_select 0, %s6, %s4
  $region1: #{tpu_custom_call.1} parent=0
    #allocation2 [shape = 'u8[12288]{0}', space=vmem, size = 0x3000, scoped, tag = 'output window, operand 0, single buffered']
    #allocation3 [shape = 's32[1]{0}', space=sflag, size = 0x4, scoped, tag = 'scoped memory for tpu_custom_call.1']
    %8 = vsyncpa [#allocation3], 0
    // Predicated region
    $region2: #{tpu_custom_call.1} parent=1 // pred_check
      _
    $region3: #{tpu_custom_call.1} parent=1 // pred_check_branch
      %10 = sbr.rel (0) target = $region5
    $region4: #{tpu_custom_call.1} parent=1 // pred_region
      _
    $region5: #{tpu_custom_call.1} parent=1 // pred_fallthru
      _
    // Predicated region
    $region6: #{tpu_custom_call.1} parent=1 // pred_check
      _
    $region7: #{tpu_custom_call.1} parent=1 // pred_check_branch
      %12 = sbr.rel (0) target = $region9
    $region8: #{tpu_custom_call.1} parent=1 // pred_region
      _
    $region9: #{tpu_custom_call.1} parent=1 // pred_fallthru
      _
    // Predicated region
    $region10: #{tpu_custom_call.1} parent=1 // pred_check
      _
    $region11: #{tpu_custom_call.1} parent=1 // pred_check_branch
      %14 = sbr.rel (0) target = $region13
    $region12: #{tpu_custom_call.1} parent=1 // pred_region
      _
    $region13: #{tpu_custom_call.1} parent=1 // pred_fallthru
      _
    %v15 = vld [vmem:[%s0] sm:$0x77]
    %v16 = vld [vmem:[%s0 + $0x8] sm:$0x7]
    %v17 = vld [vmem:[%s1] sm:$0xff]
    %v18 = vld [vmem:[%s2] sm:$0xff]
    %20 = vset.pattern.permute.xlu0 0
    %21 = vperm.xlu0 %20, %v17
    %v22 = vpop.permute.xlu0 %21
    %v26 = vlaneseq
    %v27 = vshrl.u32 %v26, 7
    %v28 = vsub.s32 0, %v27
    %v29 = vrot.slane %v15, %v28
    %v30 = vlaneseq
    %v31 = vshrl.u32 %v30, 7
    %v32 = vsub.s32 4, %v31
    %v33 = vrot.slane %v15, %v32
    %v34 = vlaneseq
    %v35 = vshrl.u32 %v34, 7
    %v36 = vsub.s32 0, %v35
    %v37 = vrot.slane %v16, %v36
    %v41 = vlaneseq
    %v42 = vshrl.u32 %v41, 7
    %v43 = vsub.s32 0, %v42
    %v44 = vrot.slane %v29, %v43
    %v45 = vlaneseq
    %v46 = vshrl.u32 %v45, 7
    %v47 = vsub.s32 0, %v46
    %v48 = vrot.slane %v33, %v47
    %v49 = vlaneseq
    %v50 = vshrl.u32 %v49, 7
    %v51 = vsub.s32 0, %v50
    %v52 = vrot.slane %v37, %v51
    %v53 = vmul.f32 %v22, %v44
    %v54 = vmul.f32 %v22, %v48
    %v55 = vmul.f32 %v22, %v52
    %56 = vset.pattern.permute.xlu0 1
    %57 = vperm.xlu0 %56, %v17
    %v58 = vpop.permute.xlu0 %57
    %v60 = vlaneseq
    %v61 = vshrl.u32 %v60, 7
    %v62 = vsub.s32 1, %v61
    %v63 = vrot.slane %v15, %v62
    %v64 = vlaneseq
    %v65 = vshrl.u32 %v64, 7
    %v66 = vsub.s32 5, %v65
    %v67 = vrot.slane %v15, %v66
    %v68 = vlaneseq
    %v69 = vshrl.u32 %v68, 7
    %v70 = vsub.s32 1, %v69
    %v71 = vrot.slane %v16, %v70
    %v75 = vlaneseq
    %v76 = vshrl.u32 %v75, 7
    %v77 = vsub.s32 1, %v76
    %v78 = vrot.slane %v63, %v77
    %v79 = vlaneseq
    %v80 = vshrl.u32 %v79, 7
    %v81 = vsub.s32 1, %v80
    %v82 = vrot.slane %v67, %v81
    %v83 = vlaneseq
    %v84 = vshrl.u32 %v83, 7
    %v85 = vsub.s32 1, %v84
    %v86 = vrot.slane %v71, %v85
    %v87 = vmul.f32 %v58, %v78
    %v88 = vmul.f32 %v58, %v82
    %v89 = vmul.f32 %v58, %v86
    %v90 = vadd.f32 %v53, %v87
    %v91 = vadd.f32 %v54, %v88
    %v92 = vadd.f32 %v55, %v89
    %93 = vset.pattern.permute.xlu0 2
    %94 = vperm.xlu0 %93, %v17
    %v95 = vpop.permute.xlu0 %94
    %v97 = vlaneseq
    %v98 = vshrl.u32 %v97, 7
    %v99 = vsub.s32 2, %v98
    %v100 = vrot.slane %v15, %v99
    %v101 = vlaneseq
    %v102 = vshrl.u32 %v101, 7
    %v103 = vsub.s32 6, %v102
    %v104 = vrot.slane %v15, %v103
    %v105 = vlaneseq
    %v106 = vshrl.u32 %v105, 7
    %v107 = vsub.s32 2, %v106
    %v108 = vrot.slane %v16, %v107
    %v112 = vlaneseq
    %v113 = vshrl.u32 %v112, 7
    %v114 = vsub.s32 2, %v113
    %v115 = vrot.slane %v100, %v114
    %v116 = vlaneseq
    %v117 = vshrl.u32 %v116, 7
    %v118 = vsub.s32 2, %v117
    %v119 = vrot.slane %v104, %v118
    %v120 = vlaneseq
    %v121 = vshrl.u32 %v120, 7
    %v122 = vsub.s32 2, %v121
    %v123 = vrot.slane %v108, %v122
    %v124 = vmul.f32 %v95, %v115
    %v125 = vmul.f32 %v95, %v119
    %v126 = vmul.f32 %v95, %v123
    %v127 = vadd.f32 %v90, %v124
    %v128 = vadd.f32 %v91, %v125
    %v129 = vadd.f32 %v92, %v126
    %131 = vset.pattern.permute.xlu0 0
    %132 = vperm.xlu0 %131, %v18
    %v133 = vpop.permute.xlu0 %132
    %v135 = vadd.f32 %v127, %v133
    %v136 = vadd.f32 %v128, %v133
    %v137 = vadd.f32 %v129, %v133
    %138 = vst [vmem:[#allocation2] sm:$0xff] %v135
    %139 = vst [vmem:[#allocation2 + $0x8] sm:$0xff] %v136
    %140 = vst [vmem:[#allocation2 + $0x10] sm:$0xff] %v137
    // Predicated region
    $region14: #{tpu_custom_call.1} parent=1 // pred_check
      _
    $region15: #{tpu_custom_call.1} parent=1 // pred_check_branch
      %142 = sbr.rel (0) target = $region17
    $region16: #{tpu_custom_call.1} parent=1 // pred_region
      %s144 = ssub.s32 384, 384
      %145 = vsyncadd [#allocation3], %s144
      %s147 = sshll.u32 [#allocation2], 4
      %s148 = int_to_ptr.vmem [resolvable:$true] %s147
      %150 = dma.vmem_to_hbm [thread:$0]  %s148, 384, %s3, [#allocation3]
    $region17: #{tpu_custom_call.1} parent=1 // pred_fallthru
      _
    // Predicated region
    $region18: #{tpu_custom_call.1} parent=1 // pred_check
      _
    $region19: #{tpu_custom_call.1} parent=1 // pred_check_branch
      %152 = sbr.rel (0) target = $region21
    $region20: #{tpu_custom_call.1} parent=1 // pred_region
      %153 = dma.done [#allocation3], 384
    $region21: #{tpu_custom_call.1} parent=1 // pred_fallthru
      _
    %154 = vsyncpa [#allocation3], 1

</llo_original>
